<compile_context>
chip_gen: v7x
topology: tpu7x:2x2x1
jax: 0.10.0
libtpu: 0.0.40
codegen_flags: <defaults>
</compile_context>

<pallas_src>
import functools

import jax
import jax.numpy as jnp
from jax.experimental import pallas as pl
from jax.experimental.pallas import tpu as pltpu

EPSILON = 1e-5


def _dice_kernel(pre_ref, tar_ref, inter_ref, union_ref, acc_i, acc_u, *, fold):
    i = pl.program_id(1)

    @pl.when(i == 0)
    def _():
        acc_i[...] = jnp.zeros_like(acc_i)
        acc_u[...] = jnp.zeros_like(acc_u)

    # Hot path: one EUP op (tanh) + VPU mul/add.  No mask, no divide.
    x = pre_ref[...].astype(jnp.float32)
    t = tar_ref[...].astype(jnp.float32)
    p = 0.5 * jnp.tanh(0.5 * x) + 0.5          # == sigmoid(x), single EUP op
    prod = p * t
    ssum = p + t

    if fold > 1:
        # Register-resident fold down to vreg height: the accumulator RMW is
        # (8, lanes) instead of (tile_r, lanes) -> ~fold x fewer VMEM stores.
        sub, lanes = acc_i.shape
        prod = prod.reshape(fold, sub, lanes).sum(axis=0)
        ssum = ssum.reshape(fold, sub, lanes).sum(axis=0)

    acc_i[...] += prod
    acc_u[...] += ssum

    @pl.when(i == pl.num_programs(1) - 1)
    def _():
        # Single cross-lane reduction per parallel block, epilogue only.
        inter_ref[...] = jnp.broadcast_to(
            jnp.sum(acc_i[...], keepdims=True), inter_ref.shape)
        union_ref[...] = jnp.broadcast_to(
            jnp.sum(acc_u[...], keepdims=True), union_ref.shape)


def _pick_lanes(total):
    """Largest multiple-of-128 lane width dividing `total`, preferring >=8 rows."""
    for cand in (4096, 2048, 1024, 512, 256, 128):
        if total % cand == 0 and total // cand >= 8:
            return cand
    for cand in (4096, 2048, 1024, 512, 256, 128):
        if total % cand == 0:
            return cand
    return 512  # ragged size: tail is zero-padded and corrected in the wrapper


@functools.partial(jax.jit, static_argnames=("block_bytes",))
def dice_loss(predict, target, *, block_bytes=4 * 1024 * 1024):
    assert predict.shape == target.shape, (
        "the size of predict and target must be equal.")
    total = predict.size
    lanes = _pick_lanes(total)
    rows = pl.cdiv(total, lanes)

    # Min sublane granularity of the narrowest input dtype (f32:8, bf16:16, int8:32).
    itemsizes = [jnp.dtype(predict.dtype).itemsize, jnp.dtype(target.dtype).itemsize]
    min_sub = max(8, 32 // max(1, min(itemsizes)))

    # Rows per block: multiple of min_sub, ~block_bytes per input block.
    bytes_per_row = lanes * max(itemsizes)
    max_rows = max(min_sub, (block_bytes // bytes_per_row) // min_sub * min_sub)
    rows_r = pl.cdiv(rows, min_sub) * min_sub
    tile_r = min(max_rows, rows_r)

    n_blocks = pl.cdiv(rows_r, tile_r)
    if n_blocks >= 2 and n_blocks % 2 == 1:
        n_blocks += 1                       # keep the 2-way split alive on v7x
    n_par = 2 if n_blocks % 2 == 0 else 1   # n_blocks == 1 -> single block
    n_steps = n_blocks // n_par

    padded_rows = n_blocks * tile_r
    padded = padded_rows * lanes
    n_pad = padded - total                  # static python int

    pre = predict.reshape(-1)
    tar = target.reshape(-1)
    if n_pad:
        # Zero padding: padded predict -> sigmoid(0)=0.5 pollutes only `union`
        # (corrected below); padded target = 0 -> intersection unaffected.
        pre = jnp.pad(pre, (0, n_pad))
        tar = jnp.pad(tar, (0, n_pad))
    pre = pre.reshape(padded_rows, lanes)
    tar = tar.reshape(padded_rows, lanes)

    fold = tile_r // 8
    kernel = functools.partial(_dice_kernel, fold=fold)

    in_spec = pl.BlockSpec((tile_r, lanes), lambda o, i: (o * n_steps + i, 0))
    out_spec = pl.BlockSpec((8, 128), lambda o, i: (o, 0))
    out_sds = jax.ShapeDtypeStruct((n_par * 8, 128), jnp.float32)

    inter_out, union_out = pl.pallas_call(
        kernel,
        out_shape=(out_sds, out_sds),
        grid_spec=pltpu.PrefetchScalarGridSpec(
            num_scalar_prefetch=0,
            grid=(n_par, n_steps),
            in_specs=[in_spec, in_spec],
            out_specs=[out_spec, out_spec],
            scratch_shapes=[
                pltpu.VMEM((8, lanes), jnp.float32),
                pltpu.VMEM((8, lanes), jnp.float32),
            ],
        ),
        compiler_params=pltpu.CompilerParams(
            dimension_semantics=("parallel", "arbitrary"),
            vmem_limit_bytes=48 * 1024 * 1024),
    )(pre, tar)

    # Each parallel block broadcast its partial sum over its (8, 128) tile;
    # element [0, 0] of each block carries the value.
    intersection = inter_out.reshape(n_par, -1)[:, 0].sum()
    union = union_out.reshape(n_par, -1)[:, 0].sum() - 0.5 * n_pad
    return 1.0 - 2.0 * (intersection + EPSILON) / (union + EPSILON)


def dice_loss_ref(predict, target):
    n = predict.shape[0]
    pre = jax.nn.sigmoid(predict).reshape(n, -1)
    tar = target.reshape(n, -1)
    intersection = (pre * tar).sum(-1).sum()
    union = (pre + tar).sum(-1).sum()
    return 1.0 - 2.0 * (intersection + EPSILON) / (union + EPSILON)


if __name__ == "__main__":
    key = jax.random.PRNGKey(0)
    k1, k2 = jax.random.split(key)
    # NCHW inputs, same as the PyTorch module expects.
    predict = jax.random.normal(k1, (2, 4, 16, 16), dtype=jnp.float32)
    target = (jax.random.uniform(k2, (2, 4, 16, 16)) > 0.5).astype(jnp.float32)

    score = dice_loss(predict, target)
    jax.block_until_ready(score)

    ref = dice_loss_ref(predict, target)
    assert jnp.allclose(score, ref, atol=1e-5, rtol=1e-5), (score, ref)
    print("KERNEL_OK")
</pallas_src>

<mosaic_0001>
module attributes {stable_mosaic.version = 11 : i64} {
  func.func @_dice_kernel(%arg0: i32, %arg1: i32, %arg2: memref<8x256xf32, #tpu.memory_space<vmem>>, %arg3: memref<8x256xf32, #tpu.memory_space<vmem>>, %arg4: memref<8x128xf32, #tpu.memory_space<vmem>>, %arg5: memref<8x128xf32, #tpu.memory_space<vmem>>, %arg6: memref<8x256xf32, #tpu.memory_space<vmem>>, %arg7: memref<8x256xf32, #tpu.memory_space<vmem>>) attributes {dimension_semantics = [#tpu.dimension_semantics<parallel>, #tpu.dimension_semantics<arbitrary>], iteration_bounds = array<i64: 1, 1>, scalar_prefetch = 0 : i64, scratch_operands = 2 : i64, tpu.core_type = #tpu.core_type<tc>, window_params = [{transform_indices = @transform_0, window_bounds = array<i64: 8, 256>}, {transform_indices = @transform_1, window_bounds = array<i64: 8, 256>}, {transform_indices = @transform_2, window_bounds = array<i64: 8, 128>}, {transform_indices = @transform_3, window_bounds = array<i64: 8, 128>}]} {
    %c0_i32 = arith.constant 0 : i32
    %0 = arith.cmpi eq, %arg1, %c0_i32 : i32
    %1 = arith.extui %0 : i1 to i32
    %c0_i32_0 = arith.constant 0 : i32
    %2 = arith.cmpi ne, %1, %c0_i32_0 : i32
    scf.if %2 {
      %cst_16 = arith.constant 0.000000e+00 : f32
      %23 = vector.broadcast %cst_16 : f32 to vector<8x256xf32>
      %c0_17 = arith.constant 0 : index
      %c0_18 = arith.constant 0 : index
      %24 = vector.load %arg6[%c0_17, %c0_18] : memref<8x256xf32, #tpu.memory_space<vmem>>, vector<8x256xf32>
      tpu.vector_store %arg6[%c0_17, %c0_18], %23 {strides = array<i32>} : memref<8x256xf32, #tpu.memory_space<vmem>>, vector<8x256xf32>,
      %cst_19 = arith.constant 0.000000e+00 : f32
      %25 = vector.broadcast %cst_19 : f32 to vector<8x256xf32>
      %c0_20 = arith.constant 0 : index
      %c0_21 = arith.constant 0 : index
      %26 = vector.load %arg7[%c0_20, %c0_21] : memref<8x256xf32, #tpu.memory_space<vmem>>, vector<8x256xf32>
      tpu.vector_store %arg7[%c0_20, %c0_21], %25 {strides = array<i32>} : memref<8x256xf32, #tpu.memory_space<vmem>>, vector<8x256xf32>,
    } else {
    }
    %c0 = arith.constant 0 : index
    %c0_1 = arith.constant 0 : index
    %3 = vector.load %arg2[%c0, %c0_1] : memref<8x256xf32, #tpu.memory_space<vmem>>, vector<8x256xf32>
    %c0_2 = arith.constant 0 : index
    %c0_3 = arith.constant 0 : index
    %4 = vector.load %arg3[%c0_2, %c0_3] : memref<8x256xf32, #tpu.memory_space<vmem>>, vector<8x256xf32>
    %cst = arith.constant 5.000000e-01 : f32
    %5 = vector.broadcast %cst : f32 to vector<8x256xf32>
    %6 = arith.mulf %5, %3 : vector<8x256xf32>
    %7 = math.tanh %6 : vector<8x256xf32>
    %cst_4 = arith.constant 5.000000e-01 : f32
    %8 = vector.broadcast %cst_4 : f32 to vector<8x256xf32>
    %9 = arith.mulf %8, %7 : vector<8x256xf32>
    %cst_5 = arith.constant 5.000000e-01 : f32
    %10 = vector.broadcast %cst_5 : f32 to vector<8x256xf32>
    %11 = arith.addf %9, %10 : vector<8x256xf32>
    %12 = arith.mulf %11, %4 : vector<8x256xf32>
    %13 = arith.addf %11, %4 : vector<8x256xf32>
    %c0_6 = arith.constant 0 : index
    %c0_7 = arith.constant 0 : index
    %14 = vector.load %arg6[%c0_6, %c0_7] : memref<8x256xf32, #tpu.memory_space<vmem>>, vector<8x256xf32>
    %15 = arith.addf %14, %12 : vector<8x256xf32>
    %c0_8 = arith.constant 0 : index
    %c0_9 = arith.constant 0 : index
    %16 = vector.load %arg6[%c0_8, %c0_9] : memref<8x256xf32, #tpu.memory_space<vmem>>, vector<8x256xf32>
    tpu.vector_store %arg6[%c0_8, %c0_9], %15 {strides = array<i32>} : memref<8x256xf32, #tpu.memory_space<vmem>>, vector<8x256xf32>,
    %c0_10 = arith.constant 0 : index
    %c0_11 = arith.constant 0 : index
    %17 = vector.load %arg7[%c0_10, %c0_11] : memref<8x256xf32, #tpu.memory_space<vmem>>, vector<8x256xf32>
    %18 = arith.addf %17, %13 : vector<8x256xf32>
    %c0_12 = arith.constant 0 : index
    %c0_13 = arith.constant 0 : index
    %19 = vector.load %arg7[%c0_12, %c0_13] : memref<8x256xf32, #tpu.memory_space<vmem>>, vector<8x256xf32>
    tpu.vector_store %arg7[%c0_12, %c0_13], %18 {strides = array<i32>} : memref<8x256xf32, #tpu.memory_space<vmem>>, vector<8x256xf32>,
    %c0_i32_14 = arith.constant 0 : i32
    %20 = arith.cmpi eq, %arg1, %c0_i32_14 : i32
    %21 = arith.extui %20 : i1 to i32
    %c0_i32_15 = arith.constant 0 : i32
    %22 = arith.cmpi ne, %21, %c0_i32_15 : i32
    scf.if %22 {
      %c0_16 = arith.constant 0 : index
      %c0_17 = arith.constant 0 : index
      %23 = vector.load %arg6[%c0_16, %c0_17] : memref<8x256xf32, #tpu.memory_space<vmem>>, vector<8x256xf32>
      %24 = vector.shape_cast %23 : vector<8x256xf32> to vector<1x8x256xf32>
      %cst_18 = arith.constant dense<0.000000e+00> : vector<1xf32>
      %25 = vector.multi_reduction <add>, %24, %cst_18 [1, 2] : vector<1x8x256xf32> to vector<1xf32>
      %26 = vector.shape_cast %25 : vector<1xf32> to vector<1x1x1xf32>
      %27 = vector.extract %26[0, 0, 0] : f32 from vector<1x1x1xf32>
      %28 = vector.broadcast %27 : f32 to vector<1x1xf32>
      %29 = vector.shape_cast %28 : vector<1x1xf32> to vector<1x1xf32>
      %30 = vector.broadcast %29 : vector<1x1xf32> to vector<8x128xf32>
      %c0_19 = arith.constant 0 : index
      %c0_20 = arith.constant 0 : index
      %31 = vector.load %arg4[%c0_19, %c0_20] : memref<8x128xf32, #tpu.memory_space<vmem>>, vector<8x128xf32>
      tpu.vector_store %arg4[%c0_19, %c0_20], %30 {strides = array<i32>} : memref<8x128xf32, #tpu.memory_space<vmem>>, vector<8x128xf32>,
      %c0_21 = arith.constant 0 : index
      %c0_22 = arith.constant 0 : index
      %32 = vector.load %arg7[%c0_21, %c0_22] : memref<8x256xf32, #tpu.memory_space<vmem>>, vector<8x256xf32>
      %33 = vector.shape_cast %32 : vector<8x256xf32> to vector<1x8x256xf32>
      %cst_23 = arith.constant dense<0.000000e+00> : vector<1xf32>
      %34 = vector.multi_reduction <add>, %33, %cst_23 [1, 2] : vector<1x8x256xf32> to vector<1xf32>
      %35 = vector.shape_cast %34 : vector<1xf32> to vector<1x1x1xf32>
      %36 = vector.extract %35[0, 0, 0] : f32 from vector<1x1x1xf32>
      %37 = vector.broadcast %36 : f32 to vector<1x1xf32>
      %38 = vector.shape_cast %37 : vector<1x1xf32> to vector<1x1xf32>
      %39 = vector.broadcast %38 : vector<1x1xf32> to vector<8x128xf32>
      %c0_24 = arith.constant 0 : index
      %c0_25 = arith.constant 0 : index
      %40 = vector.load %arg5[%c0_24, %c0_25] : memref<8x128xf32, #tpu.memory_space<vmem>>, vector<8x128xf32>
      tpu.vector_store %arg5[%c0_24, %c0_25], %39 {strides = array<i32>} : memref<8x128xf32, #tpu.memory_space<vmem>>, vector<8x128xf32>,
    } else {
    }
    return
  }
  func.func @transform_0(%arg0: i32, %arg1: i32) -> (i32, i32) {
    %c1_i32 = arith.constant 1 : i32
    %0 = arith.muli %arg0, %c1_i32 : i32
    %1 = arith.addi %0, %arg1 : i32
    %c0_i32 = arith.constant 0 : i32
    %c0_i32_0 = arith.constant 0 : i32
    return %1, %c0_i32 : i32, i32
  }
  func.func @transform_1(%arg0: i32, %arg1: i32) -> (i32, i32) {
    %c1_i32 = arith.constant 1 : i32
    %0 = arith.muli %arg0, %c1_i32 : i32
    %1 = arith.addi %0, %arg1 : i32
    %c0_i32 = arith.constant 0 : i32
    %c0_i32_0 = arith.constant 0 : i32
    return %1, %c0_i32 : i32, i32
  }
  func.func @transform_2(%arg0: i32, %arg1: i32) -> (i32, i32) {
    %c0_i32 = arith.constant 0 : i32
    %c0_i32_0 = arith.constant 0 : i32
    return %arg0, %c0_i32 : i32, i32
  }
  func.func @transform_3(%arg0: i32, %arg1: i32) -> (i32, i32) {
    %c0_i32 = arith.constant 0 : i32
    %c0_i32_0 = arith.constant 0 : i32
    return %arg0, %c0_i32 : i32, i32
  }
}

</mosaic_0001>

<llo_original>
// kernel: dice_loss.1
$region0: #{dice_loss.1}
  #allocation0 [shape = 'u32[]', space=smem, size = 0x4, offset = 0x4, fixed_abs, tag = 'smem constant byte address 0x4 - core index']
  #allocation1 [shape = 'u32[144,128]{1,0:T(1,128)}', space=vmem, size = 0x12000, scoped, tag = 'internal scratch']
  #allocation2 [shape = 'f32[8,256]{1,0:T(8,128)}', space=vmem, size = 0x2000, scoped, tag = 'scratch operand']
  #allocation3 [shape = 'f32[8,256]{1,0:T(8,128)}', space=vmem, size = 0x2000, scoped, tag = 'scratch operand']
  %s0 = inlined_call_operand.vmem [shape: f32[8,256], index: 0, kind: input, shape index: {}]
  %s1 = inlined_call_operand.vmem [shape: f32[8,256], index: 1, kind: input, shape index: {}]
  %s2 = inlined_call_operand.vmem [shape: f32[8,128], index: 2, kind: output, shape index: {0}]
  %s3 = inlined_call_operand.vmem [shape: f32[8,128], index: 3, kind: output, shape index: {1}]
  %4 = xla_tuple %s2, %s3
  %s5 = sld [smem:[#allocation0]]
  $region34: #{dice_loss.1} parent=0
    _
  %s7 = ssub.s32 1, %s5
  %s8 = scalar_select 0, %s7, %s5
  // Predicated region
  $region2: #{dice_loss.1} parent=0 // pred_check
    _
  $region3: #{dice_loss.1} parent=0 // pred_check_branch
    %10 = sbr.rel (0) target = $region5
  $region4: #{dice_loss.1} parent=0 // pred_region
    %s11 = sadd.s32 0, 0
    %p12 = scmp.lt.s32.totalorder %s11, 0
    %s13 = scalar_select %p12, %s11, 0
    %s14 = smul.addr %s13, 2
    %s15 = smul.addr %s14, 8
    %s16 = scalar_lea.vmem %s0, %s15
    %s17 = sadd.s32 0, 0
  $region5: #{dice_loss.1} parent=0 // pred_fallthru
    _
  // Predicated region
  $region6: #{dice_loss.1} parent=0 // pred_check
    _
  $region7: #{dice_loss.1} parent=0 // pred_check_branch
    %19 = sbr.rel (0) target = $region9
  $region8: #{dice_loss.1} parent=0 // pred_region
    %s20 = sadd.s32 0, 0
    %p21 = scmp.lt.s32.totalorder %s20, 0
    %s22 = scalar_select %p21, %s20, 0
    %s23 = smul.addr %s22, 2
    %s24 = smul.addr %s23, 8
    %s25 = scalar_lea.vmem %s1, %s24
    %s26 = sadd.s32 0, 0
  $region9: #{dice_loss.1} parent=0 // pred_fallthru
    _
  %s27 = sadd.s32 0, 0
  %p28 = scmp.lt.s32.totalorder %s27, 0
  %s29 = scalar_select %p28, %s27, 0
  %s30 = smul.addr %s29, 2
  %s31 = smul.addr %s30, 8
  %s32 = scalar_lea.vmem %s0, %s31
  %s33 = sadd.s32 0, 0
  %p34 = scmp.lt.s32.totalorder %s33, 0
  %s35 = scalar_select %p34, %s33, 0
  %s36 = smul.addr %s35, 2
  %s37 = smul.addr %s36, 8
  %s38 = scalar_lea.vmem %s1, %s37
  %s39 = sadd.s32 0, 0
  %p40 = scmp.lt.s32.totalorder %s39, 0
  %s41 = scalar_select %p40, %s39, 0
  %s42 = smul.addr %s41, 2
  %s43 = smul.addr %s42, 8
  %s44 = scalar_lea.vmem %s0, %s43
  %s45 = sadd.s32 0, 0
  %s46 = sadd.s32 0, 0
  %p47 = scmp.lt.s32.totalorder %s46, 0
  %s48 = scalar_select %p47, %s46, 0
  %s49 = smul.addr %s48, 2
  %s50 = smul.addr %s49, 8
  %s51 = scalar_lea.vmem %s1, %s50
  %s52 = sadd.s32 0, 0
  %p53 = scmp.eq.s32.totalorder 0, 0
  // Predicated region
  $region10: #{dice_loss.1} parent=0 // pred_check
    %p54 = pneg %p53
  $region11: #{dice_loss.1} parent=0 // pred_check_branch
    %56 = sbr.rel (%p54) target = $region13
  $region12: #{dice_loss.1} parent=0 // pred_region
    %57 = vst [vmem:[#allocation2] sm:$0xff] 0.0
    %58 = vst [vmem:[#allocation2 + $0x8] sm:$0xff] 0.0
    %59 = vst [vmem:[#allocation3] sm:$0xff] 0.0
    %60 = vst [vmem:[#allocation3 + $0x8] sm:$0xff] 0.0
  $region13: #{dice_loss.1} parent=0 // pred_fallthru
    _
  %v61 = vld [vmem:[%s44] sm:$0xff]
  %v62 = vld [vmem:[%s44 + $0x8] sm:$0xff]
  %v63 = vld [vmem:[%s51] sm:$0xff]
  %v64 = vld [vmem:[%s51 + $0x8] sm:$0xff]
  %v65 = vmul.f32 %v61, 0.5
  %v66 = vmul.f32 %v62, 0.5
  %v67 = vtanh.pop %v65
  %v68 = vtanh.pop %v66
  %v69 = vmul.f32 %v67, 0.5
  %v70 = vmul.f32 %v68, 0.5
  %v71 = vadd.f32 %v69, 0.5
  %v72 = vadd.f32 %v70, 0.5
  %v73 = vmul.f32 %v71, %v63
  %v74 = vmul.f32 %v72, %v64
  %v75 = vadd.f32 %v71, %v63
  %v76 = vadd.f32 %v72, %v64
  %v77 = vld [vmem:[#allocation2] sm:$0xff]
  %v78 = vld [vmem:[#allocation2 + $0x8] sm:$0xff]
  %v79 = vadd.f32 %v77, %v73
  %v80 = vadd.f32 %v78, %v74
  %81 = vst [vmem:[#allocation2] sm:$0xff] %v79
  %82 = vst [vmem:[#allocation2 + $0x8] sm:$0xff] %v80
  %v83 = vld [vmem:[#allocation3] sm:$0xff]
  %v84 = vld [vmem:[#allocation3 + $0x8] sm:$0xff]
  %v85 = vadd.f32 %v83, %v75
  %v86 = vadd.f32 %v84, %v76
  %87 = vst [vmem:[#allocation3] sm:$0xff] %v85
  %88 = vst [vmem:[#allocation3 + $0x8] sm:$0xff] %v86
  // Predicated region
  $region14: #{dice_loss.1} parent=0 // pred_check
    %p89 = pneg %p53
  $region15: #{dice_loss.1} parent=0 // pred_check_branch
    %91 = sbr.rel (%p89) target = $region17
  $region16: #{dice_loss.1} parent=0 // pred_region
    %v92 = vld [vmem:[#allocation2] sm:$0xff]
    %v93 = vld [vmem:[#allocation2 + $0x8] sm:$0xff]
    %v94 = vadd.f32 %v92, %v93
    %95 = vadd.xlane.f32.xlu0 %v94
    %v96 = vpop.xlane.xlu0 %95
    %v97 = vrot.slane %v96, 4
    %v98 = vadd.f32 %v96, %v97
    %v99 = vrot.slane %v98, 2
    %v100 = vadd.f32 %v98, %v99
    %v101 = vrot.slane %v100, 1
    %v102 = vadd.f32 %v100, %v101
    %s103 = vtos %v102
    %v104 = vstv %s103
    %105 = vst [vmem:[%s2] sm:$0xff] %v104
    %v106 = vld [vmem:[#allocation3] sm:$0xff]
    %v107 = vld [vmem:[#allocation3 + $0x8] sm:$0xff]
    %v108 = vadd.f32 %v106, %v107
    %109 = vadd.xlane.f32.xlu0 %v108
    %v110 = vpop.xlane.xlu0 %109
    %v111 = vrot.slane %v110, 4
    %v112 = vadd.f32 %v110, %v111
    %v113 = vrot.slane %v112, 2
    %v114 = vadd.f32 %v112, %v113
    %v115 = vrot.slane %v114, 1
    %v116 = vadd.f32 %v114, %v115
    %s117 = vtos %v116
    %v118 = vstv %s117
    %119 = vst [vmem:[%s3] sm:$0xff] %v118
  $region17: #{dice_loss.1} parent=0 // pred_fallthru
    _
  // Predicated region
  $region18: #{dice_loss.1} parent=0 // pred_check
    _
  $region19: #{dice_loss.1} parent=0 // pred_check_branch
    %121 = sbr.rel (0) target = $region21
  $region20: #{dice_loss.1} parent=0 // pred_region
    _
  $region21: #{dice_loss.1} parent=0 // pred_fallthru
    _
  // Predicated region
  $region22: #{dice_loss.1} parent=0 // pred_check
    _
  $region23: #{dice_loss.1} parent=0 // pred_check_branch
    %123 = sbr.rel (0) target = $region25
  $region24: #{dice_loss.1} parent=0 // pred_region
    _
  $region25: #{dice_loss.1} parent=0 // pred_fallthru
    _
  // Predicated region
  $region26: #{dice_loss.1} parent=0 // pred_check
    _
  $region27: #{dice_loss.1} parent=0 // pred_check_branch
    %125 = sbr.rel (0) target = $region29
  $region28: #{dice_loss.1} parent=0 // pred_region
    _
  $region29: #{dice_loss.1} parent=0 // pred_fallthru
    _
  // Predicated region
  $region30: #{dice_loss.1} parent=0 // pred_check
    _
  $region31: #{dice_loss.1} parent=0 // pred_check_branch
    %127 = sbr.rel (0) target = $region33
  $region32: #{dice_loss.1} parent=0 // pred_region
    _
  $region33: #{dice_loss.1} parent=0 // pred_fallthru
    _

</llo_original>
